<compile_context>
chip_gen: v6e
topology: v6e:2x2x1
jax: 0.10.0
libtpu: 0.0.40
codegen_flags: <defaults>
</compile_context>

<pallas_src>
import functools

import jax
import jax.numpy as jnp
from jax.experimental import pallas as pl
from jax.experimental.pallas import tpu as pltpu

_LANE = 128
_SUBLANE = 8


def _round_up(v, m):
    return ((v + m - 1) // m) * m


def _dvip_kernel(num_layers, x_ref, *refs):
    """One (row-tile, posterior-sample) grid step of the fused DVIP forward.

    F0 = x tile; for each layer l (fused weight [Wmu | Wvar], halves 128-aligned):
        A     = F @ W + b                       (single MXU matmul)
        Fmean = A[:, :width]                    (mean head, true width)
        if not last layer:
            F = Fmean + exp(0.5 * logvar) * z   (reparameterize, stays at true width)
        else (Gaussian likelihood + DVIP_Base.forward rescaling):
            mean_out = Fmean * y_std + y_mean
            std_out  = sqrt(exp(logvar) + lik_var) * y_std
    """
    nz = num_layers - 1
    z_refs = refs[:nz]
    wb_refs = refs[nz:nz + 2 * num_layers]
    ymean_ref, ystd_ref, likvar_ref = refs[nz + 2 * num_layers:
                                           nz + 2 * num_layers + 3]
    mean_out_ref, std_out_ref = refs[nz + 2 * num_layers + 3:]

    y_mean = ymean_ref[0]
    y_std = ystd_ref[0]
    lik_var = likvar_ref[0]
    dout = mean_out_ref.shape[-1]

    F = x_ref[...]
    for l in range(num_layers):
        W = wb_refs[2 * l][...]          # [K_l, 2*Hp_l]  (fused mean/log-var weight)
        b = wb_refs[2 * l + 1][...]      # [1,   2*Hp_l]
        hp = W.shape[-1] // 2            # 128-aligned boundary between the two halves
        A = jnp.dot(F, W, preferred_element_type=jnp.float32) + b
        if l < num_layers - 1:
            z = z_refs[l][...]           # [tile, H_true]  (no lane padding in HBM)
            hz = z.shape[-1]
            Fstd = jnp.exp(0.5 * A[:, hp:hp + hz])     # exp(0.5*logvar): 1 EUP op
            F = A[:, :hz] + Fstd * z                   # reparameterize
        else:
            # Gaussian likelihood: predict_mean_and_var(m, v) = (m, v + s2),
            # then DVIP_Base.forward rescaling by y_std / y_mean.
            mean_out_ref[...] = A[:, :dout] * y_std + y_mean
            var_y = jnp.exp(A[:, hp:hp + dout]) + lik_var
            std_out_ref[...] = jnp.sqrt(var_y) * y_std


def dvip_forward(x, layer_params, z_list, y_mean, y_std, lik_var, num_samples,
                 tile_rows=1024, vmem_budget_bytes=40 * 1024 * 1024):
    """DVIP_Base.forward.

    x: [N, Din]. layer_params[l] = (Wmu, bmu, Wvar, bvar). z_list holds the
    reparameterization noise for the *intermediate* layers, z_list[l]: [S, N, H_l]
    (a trailing entry for the last layer, if given, is ignored — it never affects
    the outputs). Returns (mean, std), each [S, N, Dout], float32.
    """
    N, Din = x.shape
    S = int(num_samples)
    num_layers = len(layer_params)
    assert num_layers >= 1, "DVIP kernel requires at least one VIP layer"
    Dout = layer_params[-1][0].shape[1]

    H_dims = [p[0].shape[1] for p in layer_params]
    in_dims = [Din] + H_dims[:-1]
    # Contraction (K) dims only need 8-sublane alignment; the fused matmul output
    # halves are padded to 128 so the [mean | log-var] boundary slice is lane-aligned.
    in_pads = [_round_up(d, _SUBLANE) for d in in_dims]
    H_pads = [_round_up(h, _LANE) for h in H_dims]
    z_dims = in_pads[1:]                       # width of each intermediate layer's F/z

    # ---- row-tile sizing --------------------------------------------------------
    def footprint(t):
        b = 2 * t * in_pads[0] * 4                               # x tile (dbl buffered)
        b += sum(2 * t * zd * 4 for zd in z_dims)                # z tiles (dbl buffered)
        b += 2 * 2 * t * Dout * 4                                # two output tiles
        b += sum(2 * (ip * 2 * hp + 2 * hp) * 4                  # resident weights/biases
                 for ip, hp in zip(in_pads, H_pads))             #   (counted dbl-buffered)
        b += 3 * t * 2 * max(H_pads) * 4                         # live temps (A, F, Fstd)
        return b

    tile = min(_round_up(tile_rows, _SUBLANE), _round_up(N, _SUBLANE))
    while tile > _SUBLANE and footprint(tile) > vmem_budget_bytes:
        tile = _round_up(tile // 2, _SUBLANE)
    num_row_blocks = pl.cdiv(N, tile)          # ragged last block is clipped by Pallas

    # Explicit scoped-VMEM limit: the actual footprint plus ~30% headroom (the
    # compiler's 16/32 MiB defaults are what gate compilation otherwise).
    vmem_limit = max(int(footprint(tile) * 1.3), 32 * 1024 * 1024)

    # ---- prepare inputs (no lane-inflated HBM copies) ---------------------------
    def pad_to(a, shape):
        a = a.astype(jnp.float32)
        if tuple(a.shape) == tuple(shape):
            return a
        return jnp.pad(a, [(0, s - d) for d, s in zip(a.shape, shape)])

    x_p = pad_to(x, (N, in_pads[0]))
    z_p = [pad_to(z, (S, N, zd))
           for z, zd in zip(z_list[:num_layers - 1], z_dims)]

    wb = []
    for (wmu, bmu, wvar, bvar), ip, hp, din, h in zip(
            layer_params, in_pads, H_pads, in_dims, H_dims):
        Wm = jnp.zeros((ip, hp), jnp.float32).at[:din, :h].set(wmu.astype(jnp.float32))
        Wv = jnp.zeros((ip, hp), jnp.float32).at[:din, :h].set(wvar.astype(jnp.float32))
        Bm = jnp.zeros((1, hp), jnp.float32).at[:, :h].set(bmu.astype(jnp.float32))
        Bv = jnp.zeros((1, hp), jnp.float32).at[:, :h].set(bvar.astype(jnp.float32))
        wb.append(jnp.concatenate([Wm, Wv], axis=1))     # fused [K, 2*Hp]
        wb.append(jnp.concatenate([Bm, Bv], axis=1))     # fused [1, 2*Hp]

    scalars = [jnp.asarray([y_mean], jnp.float32),
               jnp.asarray([y_std], jnp.float32),
               jnp.asarray([lik_var], jnp.float32)]

    inputs = [x_p] + z_p + wb + scalars

    # ---- BlockSpecs -------------------------------------------------------------
    # x's index map ignores the (innermost) sample axis -> one fetch per row tile,
    # reused across samples; weight/bias index maps are constant -> VMEM-resident.
    x_spec = pl.BlockSpec((tile, in_pads[0]), lambda i, s: (i, 0))
    z_specs = [pl.BlockSpec((None, tile, zd), lambda i, s: (s, i, 0)) for zd in z_dims]
    wb_specs = []
    for ip, hp in zip(in_pads, H_pads):
        wb_specs.append(pl.BlockSpec((ip, 2 * hp), lambda i, s: (0, 0)))
        wb_specs.append(pl.BlockSpec((1, 2 * hp), lambda i, s: (0, 0)))
    smem_spec = pl.BlockSpec(memory_space=pltpu.MemorySpace.SMEM)
    in_specs = [x_spec] + z_specs + wb_specs + [smem_spec] * 3

    # Outputs at the true Dout (masked store) -> far fewer HBM bytes than lane
    # padding and no wrapper re-slice.
    out_spec = pl.BlockSpec((None, tile, Dout), lambda i, s: (s, i, 0))
    out_shape = (jax.ShapeDtypeStruct((S, N, Dout), jnp.float32),
                 jax.ShapeDtypeStruct((S, N, Dout), jnp.float32))

    flops = 2 * S * N * sum(ip * 2 * hp for ip, hp in zip(in_pads, H_pads))
    transcendentals = S * N * (sum(z_dims) + 2 * Dout)
    bytes_accessed = 4 * (x_p.size + sum(z.size for z in z_p)
                          + sum(w.size for w in wb) + 2 * S * N * Dout)

    mean, std = pl.pallas_call(
        functools.partial(_dvip_kernel, num_layers),
        grid=(num_row_blocks, S),
        in_specs=in_specs,
        out_specs=(out_spec, out_spec),
        out_shape=out_shape,
        compiler_params=pltpu.CompilerParams(
            dimension_semantics=("parallel", "parallel"),
            vmem_limit_bytes=vmem_limit),
        cost_estimate=pl.CostEstimate(flops=flops,
                                      transcendentals=transcendentals,
                                      bytes_accessed=bytes_accessed),
    )(*inputs)
    return mean, std


def dvip_forward_ref(x, layer_params, z_list, y_mean, y_std, lik_var, num_samples):
    """Pure-JAX reference for correctness checking."""
    S = num_samples
    N, Din = x.shape
    F = jnp.broadcast_to(x[None].astype(jnp.float32), (S, N, Din))
    Fmean = F
    Fvar = jnp.zeros_like(F)
    for (wmu, bmu, wvar, bvar), z in zip(layer_params, z_list):
        Fmean = jnp.einsum("snd,dh->snh", F, wmu,
                           precision=jax.lax.Precision.HIGHEST) + bmu
        Fvar = jnp.exp(jnp.einsum("snd,dh->snh", F, wvar,
                                  precision=jax.lax.Precision.HIGHEST) + bvar)
        F = Fmean + jnp.sqrt(Fvar) * z
    var_y = Fvar + lik_var
    return Fmean * y_std + y_mean, jnp.sqrt(var_y) * y_std


if __name__ == "__main__":
    # Small shapes: batch N=8, data_dim=32, two VIP layers 32->32->8, S=2 samples.
    N, Din, H, Dout = 8, 32, 32, 8
    S = 2
    y_mean, y_std, lik_var = 0.5, 2.0, 0.1

    key = jax.random.PRNGKey(0)
    kx, k1, k2, k3, k5, k6, k7, kz1, kz2 = jax.random.split(key, 9)

    x = jax.random.normal(kx, (N, Din), jnp.float32)

    layer_params = [
        (jax.random.normal(k1, (Din, H), jnp.float32) * 0.1,
         jax.random.normal(k2, (1, H), jnp.float32) * 0.1,
         jax.random.normal(k3, (Din, H), jnp.float32) * 0.05,
         jnp.full((1, H), -1.0, jnp.float32)),
        (jax.random.normal(k5, (H, Dout), jnp.float32) * 0.1,
         jax.random.normal(k6, (1, Dout), jnp.float32) * 0.1,
         jax.random.normal(k7, (H, Dout), jnp.float32) * 0.05,
         jnp.full((1, Dout), -1.0, jnp.float32)),
    ]
    # Deterministic reparameterization noise (stands in for torch.Generator draws).
    # Only the first num_layers-1 entries reach the kernel: the final layer's noise
    # never affects forward() outputs (dead reparameterization).
    z_list = [jax.random.normal(kz1, (S, N, H), jnp.float32),
              jax.random.normal(kz2, (S, N, Dout), jnp.float32)]

    mean, std = dvip_forward(x, layer_params, z_list, y_mean, y_std, lik_var, S)
    jax.block_until_ready((mean, std))

    mean_ref, std_ref = dvip_forward_ref(x, layer_params, z_list,
                                         y_mean, y_std, lik_var, S)
    assert mean.shape == (S, N, Dout) and std.shape == (S, N, Dout)
    assert jnp.allclose(mean, mean_ref, atol=2e-4, rtol=2e-4)
    assert jnp.allclose(std, std_ref, atol=2e-4, rtol=2e-4)

    print("KERNEL_OK")
</pallas_src>

<mosaic_0001>
module attributes {stable_mosaic.version = 11 : i64} {
  func.func @_dvip_kernel(%arg0: i32, %arg1: i32, %arg2: memref<8x32xf32, #tpu.memory_space<vmem>>, %arg3: memref<1x8x32xf32, #tpu.memory_space<vmem>>, %arg4: memref<32x256xf32, #tpu.memory_space<vmem>>, %arg5: memref<1x256xf32, #tpu.memory_space<vmem>>, %arg6: memref<32x256xf32, #tpu.memory_space<vmem>>, %arg7: memref<1x256xf32, #tpu.memory_space<vmem>>, %arg8: memref<1xf32, #tpu.memory_space<smem>>, %arg9: memref<1xf32, #tpu.memory_space<smem>>, %arg10: memref<1xf32, #tpu.memory_space<smem>>, %arg11: memref<1x8x8xf32, #tpu.memory_space<vmem>>, %arg12: memref<1x8x8xf32, #tpu.memory_space<vmem>>) attributes {dimension_semantics = [#tpu.dimension_semantics<parallel>, #tpu.dimension_semantics<parallel>], iteration_bounds = array<i64: 1, 2>, scalar_prefetch = 0 : i64, scratch_operands = 0 : i64, tpu.core_type = #tpu.core_type<tc>, window_params = [{transform_indices = @transform_0, window_bounds = array<i64: 8, 32>}, {transform_indices = @transform_1, window_bounds = array<i64: 1, 8, 32>}, {pipeline_mode = #tpu.pipeline_mode<synchronous>, transform_indices = @transform_2, window_bounds = array<i64: 32, 256>}, {pipeline_mode = #tpu.pipeline_mode<synchronous>, transform_indices = @transform_3, window_bounds = array<i64: 1, 256>}, {pipeline_mode = #tpu.pipeline_mode<synchronous>, transform_indices = @transform_4, window_bounds = array<i64: 32, 256>}, {pipeline_mode = #tpu.pipeline_mode<synchronous>, transform_indices = @transform_5, window_bounds = array<i64: 1, 256>}, {transform_indices = @transform_6, window_bounds = array<i64: 1>}, {transform_indices = @transform_7, window_bounds = array<i64: 1>}, {transform_indices = @transform_8, window_bounds = array<i64: 1>}, {transform_indices = @transform_9, window_bounds = array<i64: 1, 8, 8>}, {transform_indices = @transform_10, window_bounds = array<i64: 1, 8, 8>}]} {
    %c0 = arith.constant 0 : index
    %0 = memref.load %arg8[%c0] : memref<1xf32, #tpu.memory_space<smem>>
    %c0_0 = arith.constant 0 : index
    %1 = memref.load %arg9[%c0_0] : memref<1xf32, #tpu.memory_space<smem>>
    %c0_1 = arith.constant 0 : index
    %2 = memref.load %arg10[%c0_1] : memref<1xf32, #tpu.memory_space<smem>>
    %c0_2 = arith.constant 0 : index
    %c0_3 = arith.constant 0 : index
    %3 = vector.load %arg2[%c0_2, %c0_3] : memref<8x32xf32, #tpu.memory_space<vmem>>, vector<8x32xf32>
    %c0_4 = arith.constant 0 : index
    %c0_5 = arith.constant 0 : index
    %4 = vector.load %arg4[%c0_4, %c0_5] : memref<32x256xf32, #tpu.memory_space<vmem>>, vector<32x256xf32>
    %c0_6 = arith.constant 0 : index
    %c0_7 = arith.constant 0 : index
    %5 = vector.load %arg5[%c0_6, %c0_7] : memref<1x256xf32, #tpu.memory_space<vmem>>, vector<1x256xf32>
    %cst = arith.constant dense<0.000000e+00> : vector<8x256xf32>
    %6 = tpu.matmul %3, %4, %cst {dimension_numbers = #tpu.dot_dimension_numbers<[1], [0], [0], [1], [0, 0, 1, 1], [], []>} : vector<8x32xf32>, vector<32x256xf32>, vector<8x256xf32> -> vector<8x256xf32>
    %7 = vector.broadcast %5 : vector<1x256xf32> to vector<8x256xf32>
    %8 = arith.addf %6, %7 : vector<8x256xf32>
    %c0_8 = arith.constant 0 : index
    %c0_9 = arith.constant 0 : index
    %c0_10 = arith.constant 0 : index
    %9 = vector.load %arg3[%c0_8, %c0_9, %c0_10] : memref<1x8x32xf32, #tpu.memory_space<vmem>>, vector<1x8x32xf32>
    %10 = vector.shape_cast %9 : vector<1x8x32xf32> to vector<8x32xf32>
    %11 = vector.extract_strided_slice %8 {offsets = [0, 128], sizes = [8, 32], strides = [1, 1]} : vector<8x256xf32> to vector<8x32xf32>
    %cst_11 = arith.constant 5.000000e-01 : f32
    %12 = vector.broadcast %cst_11 : f32 to vector<8x32xf32>
    %13 = arith.mulf %12, %11 : vector<8x32xf32>
    %14 = math.exp %13 : vector<8x32xf32>
    %15 = vector.extract_strided_slice %8 {offsets = [0, 0], sizes = [8, 32], strides = [1, 1]} : vector<8x256xf32> to vector<8x32xf32>
    %16 = arith.mulf %14, %10 : vector<8x32xf32>
    %17 = arith.addf %15, %16 : vector<8x32xf32>
    %c0_12 = arith.constant 0 : index
    %c0_13 = arith.constant 0 : index
    %18 = vector.load %arg6[%c0_12, %c0_13] : memref<32x256xf32, #tpu.memory_space<vmem>>, vector<32x256xf32>
    %c0_14 = arith.constant 0 : index
    %c0_15 = arith.constant 0 : index
    %19 = vector.load %arg7[%c0_14, %c0_15] : memref<1x256xf32, #tpu.memory_space<vmem>>, vector<1x256xf32>
    %cst_16 = arith.constant dense<0.000000e+00> : vector<8x256xf32>
    %20 = tpu.matmul %17, %18, %cst_16 {dimension_numbers = #tpu.dot_dimension_numbers<[1], [0], [0], [1], [0, 0, 1, 1], [], []>} : vector<8x32xf32>, vector<32x256xf32>, vector<8x256xf32> -> vector<8x256xf32>
    %21 = vector.broadcast %19 : vector<1x256xf32> to vector<8x256xf32>
    %22 = arith.addf %20, %21 : vector<8x256xf32>
    %23 = vector.extract_strided_slice %22 {offsets = [0, 0], sizes = [8, 8], strides = [1, 1]} : vector<8x256xf32> to vector<8x8xf32>
    %24 = vector.broadcast %1 : f32 to vector<8x8xf32>
    %25 = arith.mulf %23, %24 : vector<8x8xf32>
    %26 = vector.broadcast %0 : f32 to vector<8x8xf32>
    %27 = arith.addf %25, %26 : vector<8x8xf32>
    %c0_17 = arith.constant 0 : index
    %c0_18 = arith.constant 0 : index
    %c0_19 = arith.constant 0 : index
    %28 = vector.load %arg11[%c0_17, %c0_18, %c0_19] : memref<1x8x8xf32, #tpu.memory_space<vmem>>, vector<1x8x8xf32>
    %29 = vector.shape_cast %28 : vector<1x8x8xf32> to vector<8x8xf32>
    %30 = vector.shape_cast %27 : vector<8x8xf32> to vector<1x8x8xf32>
    tpu.vector_store %arg11[%c0_17, %c0_18, %c0_19], %30 {strides = array<i32>} : memref<1x8x8xf32, #tpu.memory_space<vmem>>, vector<1x8x8xf32>,
    %31 = vector.extract_strided_slice %22 {offsets = [0, 128], sizes = [8, 8], strides = [1, 1]} : vector<8x256xf32> to vector<8x8xf32>
    %32 = math.exp %31 : vector<8x8xf32>
    %33 = vector.broadcast %2 : f32 to vector<8x8xf32>
    %34 = arith.addf %32, %33 : vector<8x8xf32>
    %35 = math.sqrt %34 : vector<8x8xf32>
    %36 = vector.broadcast %1 : f32 to vector<8x8xf32>
    %37 = arith.mulf %35, %36 : vector<8x8xf32>
    %c0_20 = arith.constant 0 : index
    %c0_21 = arith.constant 0 : index
    %c0_22 = arith.constant 0 : index
    %38 = vector.load %arg12[%c0_20, %c0_21, %c0_22] : memref<1x8x8xf32, #tpu.memory_space<vmem>>, vector<1x8x8xf32>
    %39 = vector.shape_cast %38 : vector<1x8x8xf32> to vector<8x8xf32>
    %40 = vector.shape_cast %37 : vector<8x8xf32> to vector<1x8x8xf32>
    tpu.vector_store %arg12[%c0_20, %c0_21, %c0_22], %40 {strides = array<i32>} : memref<1x8x8xf32, #tpu.memory_space<vmem>>, vector<1x8x8xf32>,
    return
  }
  func.func @transform_0(%arg0: i32, %arg1: i32) -> (i32, i32) {
    %c0_i32 = arith.constant 0 : i32
    %c0_i32_0 = arith.constant 0 : i32
    return %arg0, %c0_i32 : i32, i32
  }
  func.func @transform_1(%arg0: i32, %arg1: i32) -> (i32, i32, i32) {
    %c0_i32 = arith.constant 0 : i32
    %c0_i32_0 = arith.constant 0 : i32
    return %arg1, %arg0, %c0_i32 : i32, i32, i32
  }
  func.func @transform_2(%arg0: i32, %arg1: i32) -> (i32, i32) {
    %c0_i32 = arith.constant 0 : i32
    %c0_i32_0 = arith.constant 0 : i32
    %c0_i32_1 = arith.constant 0 : i32
    return %c0_i32, %c0_i32_0 : i32, i32
  }
  func.func @transform_3(%arg0: i32, %arg1: i32) -> (i32, i32) {
    %c0_i32 = arith.constant 0 : i32
    %c0_i32_0 = arith.constant 0 : i32
    %c0_i32_1 = arith.constant 0 : i32
    return %c0_i32, %c0_i32_0 : i32, i32
  }
  func.func @transform_4(%arg0: i32, %arg1: i32) -> (i32, i32) {
    %c0_i32 = arith.constant 0 : i32
    %c0_i32_0 = arith.constant 0 : i32
    %c0_i32_1 = arith.constant 0 : i32
    return %c0_i32, %c0_i32_0 : i32, i32
  }
  func.func @transform_5(%arg0: i32, %arg1: i32) -> (i32, i32) {
    %c0_i32 = arith.constant 0 : i32
    %c0_i32_0 = arith.constant 0 : i32
    %c0_i32_1 = arith.constant 0 : i32
    return %c0_i32, %c0_i32_0 : i32, i32
  }
  func.func @transform_6(%arg0: i32, %arg1: i32) -> i32 {
    %c0_i32 = arith.constant 0 : i32
    %c0_i32_0 = arith.constant 0 : i32
    return %c0_i32 : i32
  }
  func.func @transform_7(%arg0: i32, %arg1: i32) -> i32 {
    %c0_i32 = arith.constant 0 : i32
    %c0_i32_0 = arith.constant 0 : i32
    return %c0_i32 : i32
  }
  func.func @transform_8(%arg0: i32, %arg1: i32) -> i32 {
    %c0_i32 = arith.constant 0 : i32
    %c0_i32_0 = arith.constant 0 : i32
    return %c0_i32 : i32
  }
  func.func @transform_9(%arg0: i32, %arg1: i32) -> (i32, i32, i32) {
    %c0_i32 = arith.constant 0 : i32
    %c0_i32_0 = arith.constant 0 : i32
    return %arg1, %arg0, %c0_i32 : i32, i32, i32
  }
  func.func @transform_10(%arg0: i32, %arg1: i32) -> (i32, i32, i32) {
    %c0_i32 = arith.constant 0 : i32
    %c0_i32_0 = arith.constant 0 : i32
    return %arg1, %arg0, %c0_i32 : i32, i32, i32
  }
}

</mosaic_0001>

<llo_original>
// kernel: tpu_custom_call.1
$region0: #{tpu_custom_call.1}
  #allocation0 [shape = 'u32[]', space=smem, size = 0x4, offset = 0x4, fixed_abs, tag = 'smem constant byte address 0x4 - core index']
  #allocation1 [shape = 'u32[144,128]{1,0:T(1,128)}', space=vmem, size = 0x12000, scoped, tag = 'internal scratch']
  #allocation2 [shape = 'f32[1]{0:T(128)S(6)}', space=smem, size = 0x200, scoped, tag = 'scoped memory for tpu_custom_call.1']
  #allocation3 [shape = 'f32[1]{0:T(128)S(6)}', space=smem, size = 0x200, scoped, tag = 'scoped memory for tpu_custom_call.1']
  #allocation4 [shape = 'f32[1]{0:T(128)S(6)}', space=smem, size = 0x200, scoped, tag = 'scoped memory for tpu_custom_call.1']
  %s0 = inlined_call_operand.hbm [shape: f32[8,32], index: 0, kind: input, shape index: {}]
  %s1 = inlined_call_operand.hbm [shape: f32[2,8,32], index: 1, kind: input, shape index: {}]
  %s2 = inlined_call_operand.hbm [shape: f32[32,256], index: 2, kind: input, shape index: {}]
  %s3 = inlined_call_operand.vmem [shape: f32[1,256], index: 3, kind: input, shape index: {}]
  %s4 = inlined_call_operand.hbm [shape: f32[32,256], index: 4, kind: input, shape index: {}]
  %s5 = inlined_call_operand.vmem [shape: f32[1,256], index: 5, kind: input, shape index: {}]
  %s6 = inlined_call_operand.<no memory space> [shape: f32[1], index: 6, kind: input, shape index: {}]
  %s7 = inlined_call_operand.<no memory space> [shape: f32[1], index: 7, kind: input, shape index: {}]
  %s8 = inlined_call_operand.<no memory space> [shape: f32[1], index: 8, kind: input, shape index: {}]
  %s9 = inlined_call_operand.hbm [shape: f32[2,8,8], index: 9, kind: output, shape index: {0}]
  %s10 = inlined_call_operand.hbm [shape: f32[2,8,8], index: 10, kind: output, shape index: {1}]
  %11 = xla_tuple %s9, %s10
  %s12 = sld [smem:[#allocation0]]
  $region93: #{tpu_custom_call.1} parent=0
    _
  %s14 = ssub.s32 1, %s12
  %s15 = scalar_select 0, %s14, %s12
  %16 = sst [smem:[#allocation2]] %s6
  %17 = sst [smem:[#allocation3]] %s7
  %18 = sst [smem:[#allocation4]] %s8
  $region1: #{tpu_custom_call.1} parent=0
    #allocation5 [shape = 'u8[4096]{0}', space=vmem, size = 0x1000, scoped, tag = 'input window, operand 0, single buffered']
    #allocation6 [shape = 's32[2]{0}', space=sflag, size = 0x8, scoped, tag = 'scoped memory for tpu_custom_call.1']
    #allocation7 [shape = 's32[2]{0}', space=sflag, size = 0x8, scoped, tag = 'scoped memory for tpu_custom_call.1']
    #allocation8 [shape = 'u8[8192]{0}', space=vmem, size = 0x2000, scoped, tag = 'input window, operand 1']
    #allocation9 [shape = 's32[2]{0}', space=sflag, size = 0x8, scoped, tag = 'scoped memory for tpu_custom_call.1']
    #allocation10 [shape = 'u8[32768]{0}', space=vmem, size = 0x8000, scoped, tag = 'input window, operand 2, single buffered']
    #allocation11 [shape = 'u8[32768]{0}', space=vmem, size = 0x8000, scoped, tag = 'input window, operand 4, single buffered']
    #allocation12 [shape = 's32[1]{0}', space=sflag, size = 0x4, scoped, tag = 'scoped memory for tpu_custom_call.1']
    #allocation13 [shape = 'u8[8192]{0}', space=vmem, size = 0x2000, scoped, tag = 'output window, operand 0']
    #allocation14 [shape = 'u8[8192]{0}', space=vmem, size = 0x2000, scoped, tag = 'output window, operand 1']
    #allocation15 [shape = 's32[2]{0}', space=sflag, size = 0x8, scoped, tag = 'scoped memory for tpu_custom_call.1']
    %19 = vsyncpa [#allocation6], 0
    %20 = vsyncpa [#allocation9], 0
    %s21 = scalar_lea.sflag [#allocation9], 1
    %22 = vsyncpa %s21, 0
    %23 = vsyncpa [#allocation12], 0
    %24 = vsyncpa [#allocation7], 0
    %s25 = scalar_lea.sflag [#allocation7], 1
    %26 = vsyncpa %s25, 0
    %27 = vsyncpa [#allocation15], 0
    %s28 = scalar_lea.sflag [#allocation15], 1
    %29 = vsyncpa %s28, 0
    loop: start=0, step=1, limit=4
    $region2: #{tpu_custom_call.1} parent=1 // loop_pre_header
      _
    $region3: #{tpu_custom_call.1} parent=1 // loop_header
      %s31 = sphi 0, %s35
      %p32 = scmp.ge.s32.totalorder %s31, 4
      %s38 = sphi 0, %s50
      %s39 = sphi 0, %s46
      %s40 = sphi 0, %s38
      %s41 = sphi 0, %s39
      %s42 = sphi 0, %s40
      %s43 = sphi 0, %s41
      %s53 = sphi 0, %s55
      %s56 = sphi 0, %s53
      %s57 = sphi 0, %s56
      %s73 = sphi 0, %s57
      %s81 = sphi 0, %s83
      %s84 = sphi 0, %s81
      %s85 = sphi 0, %s84
      %s101 = sphi 0, %s85
      %s105 = sphi 0, %s105
      %s107 = sphi 0, %s105
      %s108 = sphi 0, %s107
      %s122 = sphi 0, %s108
      %s126 = sphi 0, %s126
      %s128 = sphi 0, %s126
      %s129 = sphi 0, %s128
      %s143 = sphi 0, %s129
      %s147 = sphi 0, %s147
      %s149 = sphi 0, %s147
      %s150 = sphi 0, %s149
      %s164 = sphi 0, %s150
      %s168 = sphi 0, %s168
      %s170 = sphi 0, %s168
      %s171 = sphi 0, %s170
      %s185 = sphi 0, %s171
      %s189 = sphi 0, %s189
      %s191 = sphi 0, %s189
      %s192 = sphi 0, %s191
      %s206 = sphi 0, %s192
      %s210 = sphi 0, %s210
      %s212 = sphi 0, %s210
      %s213 = sphi 0, %s212
      %s227 = sphi 0, %s213
      %s231 = sphi 0, %s231
      %s233 = sphi 0, %s231
      %s234 = sphi 0, %s233
      %s248 = sphi 0, %s234
      %s256 = sphi 0, %s258
      %s259 = sphi 0, %s256
      %s260 = sphi 0, %s259
      %s276 = sphi 0, %s260
      %s284 = sphi 0, %s286
      %s287 = sphi 0, %s284
      %s288 = sphi 0, %s287
      %s304 = sphi 0, %s288
    $region4: #{tpu_custom_call.1} parent=1 // loop_header_branch
      %34 = sbr.rel (%p32) target = $region8
    $region5: #{tpu_custom_call.1} parent=1 // loop_body
      %s36 = ssub.s32 %s31, 1
      %s37 = ssub.s32 %s31, 2
      %s44 = sadd.s32 1, %s39
      %p45 = scmp.ge.s32.totalorder %s44, 2
      %s46 = scalar_select %p45, 0, %s44
      %s47 = sadd.s32 1, %s38
      %s48 = scalar_select %p45, %s47, %s38
      %p49 = scmp.ge.s32.totalorder %s48, 1
      %s50 = scalar_select %p49, 0, %s48
      %s51 = ssub.s32 %s38, %s50
      %p52 = scmp.eq.s32.totalorder %s51, 0
      %s54 = sadd.s32 %s53, 1
      %s55 = scalar_select %p52, %s53, %s54
      %p58 = pneg %p52
      %p59 = scmp.eq.s32.totalorder %s31, 1
      %p60 = por %p58, %p59
      %p61 = scmp.ne.s32.totalorder %s53, %s56
      %p62 = scmp.eq.s32.totalorder %s31, 0
      %p63 = por %p61, %p62
      %p64 = scmp.ne.s32.totalorder %s53, %s56
      %p65 = scmp.eq.s32.totalorder %s36, 1
      %p66 = por %p64, %p65
      %p67 = scmp.ne.s32.totalorder %s56, %s57
      %p68 = scmp.eq.s32.totalorder %s36, 0
      %p69 = por %p67, %p68
      %p70 = scmp.ne.s32.totalorder %s56, %s57
      %p71 = scmp.eq.s32.totalorder %s37, 1
      %p72 = por %p70, %p71
      %p74 = scmp.ne.s32.totalorder %s57, %s73
      %p75 = scmp.eq.s32.totalorder %s37, 0
      %p76 = por %p74, %p75
      %s77 = ssub.s32 %s39, %s46
      %s78 = ssub.s32 %s38, %s50
      %s79 = sor.u32 %s77, %s78
      %p80 = scmp.eq.s32.totalorder %s79, 0
      %s82 = sadd.s32 %s81, 1
      %s83 = scalar_select %p80, %s81, %s82
      %p86 = pneg %p80
      %p87 = scmp.eq.s32.totalorder %s31, 1
      %p88 = por %p86, %p87
      %p89 = scmp.ne.s32.totalorder %s81, %s84
      %p90 = scmp.eq.s32.totalorder %s31, 0
      %p91 = por %p89, %p90
      %p92 = scmp.ne.s32.totalorder %s81, %s84
      %p93 = scmp.eq.s32.totalorder %s36, 1
      %p94 = por %p92, %p93
      %p95 = scmp.ne.s32.totalorder %s84, %s85
      %p96 = scmp.eq.s32.totalorder %s36, 0
      %p97 = por %p95, %p96
      %p98 = scmp.ne.s32.totalorder %s84, %s85
      %p99 = scmp.eq.s32.totalorder %s37, 1
      %p100 = por %p98, %p99
      %p102 = scmp.ne.s32.totalorder %s85, %s101
      %p103 = scmp.eq.s32.totalorder %s37, 0
      %p104 = por %p102, %p103
      %s106 = sadd.s32 %s105, 1
      %p109 = scmp.eq.s32.totalorder %s31, 1
      %p110 = scmp.ne.s32.totalorder %s105, %s107
      %p111 = scmp.eq.s32.totalorder %s31, 0
      %p112 = por %p110, %p111
      %p113 = scmp.ne.s32.totalorder %s105, %s107
      %p114 = scmp.eq.s32.totalorder %s36, 1
      %p115 = por %p113, %p114
      %p116 = scmp.ne.s32.totalorder %s107, %s108
      %p117 = scmp.eq.s32.totalorder %s36, 0
      %p118 = por %p116, %p117
      %p119 = scmp.ne.s32.totalorder %s107, %s108
      %p120 = scmp.eq.s32.totalorder %s37, 1
      %p121 = por %p119, %p120
      %p123 = scmp.ne.s32.totalorder %s108, %s122
      %p124 = scmp.eq.s32.totalorder %s37, 0
      %p125 = por %p123, %p124
      %s127 = sadd.s32 %s126, 1
      %p130 = scmp.eq.s32.totalorder %s31, 1
      %p131 = scmp.ne.s32.totalorder %s126, %s128
      %p132 = scmp.eq.s32.totalorder %s31, 0
      %p133 = por %p131, %p132
      %p134 = scmp.ne.s32.totalorder %s126, %s128
      %p135 = scmp.eq.s32.totalorder %s36, 1
      %p136 = por %p134, %p135
      %p137 = scmp.ne.s32.totalorder %s128, %s129
      %p138 = scmp.eq.s32.totalorder %s36, 0
      %p139 = por %p137, %p138
      %p140 = scmp.ne.s32.totalorder %s128, %s129
      %p141 = scmp.eq.s32.totalorder %s37, 1
      %p142 = por %p140, %p141
      %p144 = scmp.ne.s32.totalorder %s129, %s143
      %p145 = scmp.eq.s32.totalorder %s37, 0
      %p146 = por %p144, %p145
      %s148 = sadd.s32 %s147, 1
      %p151 = scmp.eq.s32.totalorder %s31, 1
      %p152 = scmp.ne.s32.totalorder %s147, %s149
      %p153 = scmp.eq.s32.totalorder %s31, 0
      %p154 = por %p152, %p153
      %p155 = scmp.ne.s32.totalorder %s147, %s149
      %p156 = scmp.eq.s32.totalorder %s36, 1
      %p157 = por %p155, %p156
      %p158 = scmp.ne.s32.totalorder %s149, %s150
      %p159 = scmp.eq.s32.totalorder %s36, 0
      %p160 = por %p158, %p159
      %p161 = scmp.ne.s32.totalorder %s149, %s150
      %p162 = scmp.eq.s32.totalorder %s37, 1
      %p163 = por %p161, %p162
      %p165 = scmp.ne.s32.totalorder %s150, %s164
      %p166 = scmp.eq.s32.totalorder %s37, 0
      %p167 = por %p165, %p166
      %s169 = sadd.s32 %s168, 1
      %p172 = scmp.eq.s32.totalorder %s31, 1
      %p173 = scmp.ne.s32.totalorder %s168, %s170
      %p174 = scmp.eq.s32.totalorder %s31, 0
      %p175 = por %p173, %p174
      %p176 = scmp.ne.s32.totalorder %s168, %s170
      %p177 = scmp.eq.s32.totalorder %s36, 1
      %p178 = por %p176, %p177
      %p179 = scmp.ne.s32.totalorder %s170, %s171
      %p180 = scmp.eq.s32.totalorder %s36, 0
      %p181 = por %p179, %p180
      %p182 = scmp.ne.s32.totalorder %s170, %s171
      %p183 = scmp.eq.s32.totalorder %s37, 1
      %p184 = por %p182, %p183
      %p186 = scmp.ne.s32.totalorder %s171, %s185
      %p187 = scmp.eq.s32.totalorder %s37, 0
      %p188 = por %p186, %p187
      %s190 = sadd.s32 %s189, 1
      %p193 = scmp.eq.s32.totalorder %s31, 1
      %p194 = scmp.ne.s32.totalorder %s189, %s191
      %p195 = scmp.eq.s32.totalorder %s31, 0
      %p196 = por %p194, %p195
      %p197 = scmp.ne.s32.totalorder %s189, %s191
      %p198 = scmp.eq.s32.totalorder %s36, 1
      %p199 = por %p197, %p198
      %p200 = scmp.ne.s32.totalorder %s191, %s192
      %p201 = scmp.eq.s32.totalorder %s36, 0
      %p202 = por %p200, %p201
      %p203 = scmp.ne.s32.totalorder %s191, %s192
      %p204 = scmp.eq.s32.totalorder %s37, 1
      %p205 = por %p203, %p204
      %p207 = scmp.ne.s32.totalorder %s192, %s206
      %p208 = scmp.eq.s32.totalorder %s37, 0
      %p209 = por %p207, %p208
      %s211 = sadd.s32 %s210, 1
      %p214 = scmp.eq.s32.totalorder %s31, 1
      %p215 = scmp.ne.s32.totalorder %s210, %s212
      %p216 = scmp.eq.s32.totalorder %s31, 0
      %p217 = por %p215, %p216
      %p218 = scmp.ne.s32.totalorder %s210, %s212
      %p219 = scmp.eq.s32.totalorder %s36, 1
      %p220 = por %p218, %p219
      %p221 = scmp.ne.s32.totalorder %s212, %s213
      %p222 = scmp.eq.s32.totalorder %s36, 0
      %p223 = por %p221, %p222
      %p224 = scmp.ne.s32.totalorder %s212, %s213
      %p225 = scmp.eq.s32.totalorder %s37, 1
      %p226 = por %p224, %p225
      %p228 = scmp.ne.s32.totalorder %s213, %s227
      %p229 = scmp.eq.s32.totalorder %s37, 0
      %p230 = por %p228, %p229
      %s232 = sadd.s32 %s231, 1
      %p235 = scmp.eq.s32.totalorder %s31, 1
      %p236 = scmp.ne.s32.totalorder %s231, %s233
      %p237 = scmp.eq.s32.totalorder %s31, 0
      %p238 = por %p236, %p237
      %p239 = scmp.ne.s32.totalorder %s231, %s233
      %p240 = scmp.eq.s32.totalorder %s36, 1
      %p241 = por %p239, %p240
      %p242 = scmp.ne.s32.totalorder %s233, %s234
      %p243 = scmp.eq.s32.totalorder %s36, 0
      %p244 = por %p242, %p243
      %p245 = scmp.ne.s32.totalorder %s233, %s234
      %p246 = scmp.eq.s32.totalorder %s37, 1
      %p247 = por %p245, %p246
      %p249 = scmp.ne.s32.totalorder %s234, %s248
      %p250 = scmp.eq.s32.totalorder %s37, 0
      %p251 = por %p249, %p250
      %s252 = ssub.s32 %s39, %s46
      %s253 = ssub.s32 %s38, %s50
      %s254 = sor.u32 %s252, %s253
      %p255 = scmp.eq.s32.totalorder %s254, 0
      %s257 = sadd.s32 %s256, 1
      %s258 = scalar_select %p255, %s256, %s257
      %p261 = pneg %p255
      %p262 = scmp.eq.s32.totalorder %s31, 1
      %p263 = por %p261, %p262
      %p264 = scmp.ne.s32.totalorder %s256, %s259
      %p265 = scmp.eq.s32.totalorder %s31, 0
      %p266 = por %p264, %p265
      %p267 = scmp.ne.s32.totalorder %s256, %s259
      %p268 = scmp.eq.s32.totalorder %s36, 1
      %p269 = por %p267, %p268
      %p270 = scmp.ne.s32.totalorder %s259, %s260
      %p271 = scmp.eq.s32.totalorder %s36, 0
      %p272 = por %p270, %p271
      %p273 = scmp.ne.s32.totalorder %s259, %s260
      %p274 = scmp.eq.s32.totalorder %s37, 1
      %p275 = por %p273, %p274
      %p277 = scmp.ne.s32.totalorder %s260, %s276
      %p278 = scmp.eq.s32.totalorder %s37, 0
      %p279 = por %p277, %p278
      %s280 = ssub.s32 %s39, %s46
      %s281 = ssub.s32 %s38, %s50
      %s282 = sor.u32 %s280, %s281
      %p283 = scmp.eq.s32.totalorder %s282, 0
      %s285 = sadd.s32 %s284, 1
      %s286 = scalar_select %p283, %s284, %s285
      %p289 = pneg %p283
      %p290 = scmp.eq.s32.totalorder %s31, 1
      %p291 = por %p289, %p290
      %p292 = scmp.ne.s32.totalorder %s284, %s287
      %p293 = scmp.eq.s32.totalorder %s31, 0
      %p294 = por %p292, %p293
      %p295 = scmp.ne.s32.totalorder %s284, %s287
      %p296 = scmp.eq.s32.totalorder %s36, 1
      %p297 = por %p295, %p296
      %p298 = scmp.ne.s32.totalorder %s287, %s288
      %p299 = scmp.eq.s32.totalorder %s36, 0
      %p300 = por %p298, %p299
      %p301 = scmp.ne.s32.totalorder %s287, %s288
      %p302 = scmp.eq.s32.totalorder %s37, 1
      %p303 = por %p301, %p302
      %p305 = scmp.ne.s32.totalorder %s288, %s304
      %p306 = scmp.eq.s32.totalorder %s37, 0
      %p307 = por %p305, %p306
      %p308 = scmp.le.s32.totalorder 1, %s31
      %p309 = scmp.lt.s32.totalorder %s31, 3
      %p310 = pnand %p308, %p309
      %p311 = pneg %p310
      // Predicated region
      $region9: #{tpu_custom_call.1} parent=5 // pred_check
        _
      $region10: #{tpu_custom_call.1} parent=5 // pred_check_branch
        %313 = sbr.rel (%p310) target = $region12
      $region11: #{tpu_custom_call.1} parent=5 // pred_region
        %s314 = ssub.s32 %s31, 1
        // Predicated region
        $region13: #{tpu_custom_call.1} parent=11 // pred_check
          %p315 = pneg %p69
        $region14: #{tpu_custom_call.1} parent=11 // pred_check_branch
          %317 = sbr.rel (%p315) target = $region16
        $region15: #{tpu_custom_call.1} parent=11 // pred_region
          %s319 = ssub.s32 128, 128
          %320 = vsyncadd [#allocation6], %s319
          %s321 = smul.addr %s40, 128
          %s322 = scalar_lea.hbm %s0, %s321
          %s324 = sshll.u32 [#allocation5], 4
          %s325 = int_to_ptr.vmem [resolvable:$true] %s324
          %327 = dma.hbm_to_vmem [thread:$0]  %s322, 128, %s325, [#allocation6]
        $region16: #{tpu_custom_call.1} parent=11 // pred_fallthru
          _
        // Predicated region
        $region17: #{tpu_custom_call.1} parent=11 // pred_check
          %p328 = pneg %p118
        $region18: #{tpu_custom_call.1} parent=11 // pred_check_branch
          %330 = sbr.rel (%p328) target = $region20
        $region19: #{tpu_custom_call.1} parent=11 // pred_region
          %s332 = ssub.s32 1024, 1024
          %333 = vsyncadd [#allocation9], %s332
          %s334 = sshll.u32 [#allocation10], 4
          %s335 = int_to_ptr.vmem [resolvable:$true] %s334
          %340 = dma.hbm_to_vmem [thread:$0]  %s2, 1024, %s335, [#allocation9], 256, 256, 16
        $region20: #{tpu_custom_call.1} parent=11 // pred_fallthru
          _
        // Predicated region
        $region21: #{tpu_custom_call.1} parent=11 // pred_check
          %p341 = pneg %p139
        $region22: #{tpu_custom_call.1} parent=11 // pred_check_branch
          %343 = sbr.rel (%p341) target = $region24
        $region23: #{tpu_custom_call.1} parent=11 // pred_region
          _
        $region24: #{tpu_custom_call.1} parent=11 // pred_fallthru
          _
        // Predicated region
        $region25: #{tpu_custom_call.1} parent=11 // pred_check
          %p344 = pneg %p160
        $region26: #{tpu_custom_call.1} parent=11 // pred_check_branch
          %346 = sbr.rel (%p344) target = $region28
        $region27: #{tpu_custom_call.1} parent=11 // pred_region
          %s348 = ssub.s32 1024, 1024
          %349 = vsyncadd [#allocation12], %s348
          %s350 = sshll.u32 [#allocation11], 4
          %s351 = int_to_ptr.vmem [resolvable:$true] %s350
          %356 = dma.hbm_to_vmem [thread:$0]  %s4, 1024, %s351, [#allocation12], 256, 256, 16
        $region28: #{tpu_custom_call.1} parent=11 // pred_fallthru
          _
        // Predicated region
        $region29: #{tpu_custom_call.1} parent=11 // pred_check
          %p357 = pneg %p181
        $region30: #{tpu_custom_call.1} parent=11 // pred_check_branch
          %359 = sbr.rel (%p357) target = $region32
        $region31: #{tpu_custom_call.1} parent=11 // pred_region
          _
        $region32: #{tpu_custom_call.1} parent=11 // pred_fallthru
          _
        // Predicated region
        $region33: #{tpu_custom_call.1} parent=11 // pred_check
          %p360 = pneg %p202
        $region34: #{tpu_custom_call.1} parent=11 // pred_check_branch
          %362 = sbr.rel (%p360) target = $region36
        $region35: #{tpu_custom_call.1} parent=11 // pred_region
          _
        $region36: #{tpu_custom_call.1} parent=11 // pred_fallthru
          _
        // Predicated region
        $region37: #{tpu_custom_call.1} parent=11 // pred_check
          %p363 = pneg %p223
        $region38: #{tpu_custom_call.1} parent=11 // pred_check_branch
          %365 = sbr.rel (%p363) target = $region40
        $region39: #{tpu_custom_call.1} parent=11 // pred_region
          _
        $region40: #{tpu_custom_call.1} parent=11 // pred_fallthru
          _
        // Predicated region
        $region41: #{tpu_custom_call.1} parent=11 // pred_check
          %p366 = pneg %p244
        $region42: #{tpu_custom_call.1} parent=11 // pred_check_branch
          %368 = sbr.rel (%p366) target = $region44
        $region43: #{tpu_custom_call.1} parent=11 // pred_region
          _
        $region44: #{tpu_custom_call.1} parent=11 // pred_fallthru
          _
      $region12: #{tpu_custom_call.1} parent=5 // pred_fallthru
        _
      %p369 = scmp.lt.s32.totalorder %s31, 2
      // Predicated region
      $region45: #{tpu_custom_call.1} parent=5 // pred_check
        %p370 = pneg %p369
      $region46: #{tpu_custom_call.1} parent=5 // pred_check_branch
        %372 = sbr.rel (%p370) target = $region48
      $region47: #{tpu_custom_call.1} parent=5 // pred_region
        // Predicated region
        $region49: #{tpu_custom_call.1} parent=47 // pred_check
          %p373 = pneg %p91
        $region50: #{tpu_custom_call.1} parent=47 // pred_check_branch
          %375 = sbr.rel (%p373) target = $region52
        $region51: #{tpu_custom_call.1} parent=47 // pred_region
          %s376 = sand.u32 %s31, 1
          %s377 = scalar_lea.sflag [#allocation9], %s376
          %s378 = sand.u32 %s81, 1
          %s379 = smul.addr %s378, 8
          %s380 = scalar_lea.vmem [#allocation8], %s379
          %s382 = ssub.s32 128, 128
          %383 = vsyncadd %s377, %s382
          %s384 = sadd.s32 %s38, %s39
          %s385 = smul.addr %s384, 128
          %s386 = scalar_lea.hbm %s1, %s385
          %s388 = sshll.u32 %s380, 4
          %s389 = int_to_ptr.vmem [resolvable:$true] %s388
          %391 = dma.hbm_to_vmem [thread:$0]  %s386, 128, %s389, %s377
        $region52: #{tpu_custom_call.1} parent=47 // pred_fallthru
          _
      $region48: #{tpu_custom_call.1} parent=5 // pred_fallthru
        _
      %p392 = scmp.le.s32.totalorder 1, %s31
      %p393 = scmp.lt.s32.totalorder %s31, 3
      %p394 = pnand %p392, %p393
      %p395 = pneg %p394
      // Predicated region
      $region53: #{tpu_custom_call.1} parent=5 // pred_check
        _
      $region54: #{tpu_custom_call.1} parent=5 // pred_check_branch
        %397 = sbr.rel (%p394) target = $region56
      $region55: #{tpu_custom_call.1} parent=5 // pred_region
        %s398 = ssub.s32 %s31, 1
        // Predicated region
        $region57: #{tpu_custom_call.1} parent=55 // pred_check
          %p399 = pneg %p69
        $region58: #{tpu_custom_call.1} parent=55 // pred_check_branch
          %401 = sbr.rel (%p399) target = $region60
        $region59: #{tpu_custom_call.1} parent=55 // pred_region
          %402 = dma.done [#allocation6], 128
        $region60: #{tpu_custom_call.1} parent=55 // pred_fallthru
          _
        %s403 = sand.u32 %s36, 1
        %s404 = scalar_lea.sflag [#allocation9], %s403
        %s405 = sand.u32 %s84, 1
        %s406 = smul.addr %s405, 8
        %s407 = scalar_lea.vmem [#allocation8], %s406
        // Predicated region
        $region61: #{tpu_custom_call.1} parent=55 // pred_check
          %p408 = pneg %p97
        $region62: #{tpu_custom_call.1} parent=55 // pred_check_branch
          %410 = sbr.rel (%p408) target = $region64
        $region63: #{tpu_custom_call.1} parent=55 // pred_region
          %411 = dma.done %s404, 128
        $region64: #{tpu_custom_call.1} parent=55 // pred_fallthru
          _
        // Predicated region
        $region65: #{tpu_custom_call.1} parent=55 // pred_check
          %p412 = pneg %p118
        $region66: #{tpu_custom_call.1} parent=55 // pred_check_branch
          %414 = sbr.rel (%p412) target = $region68
        $region67: #{tpu_custom_call.1} parent=55 // pred_region
          %415 = dma.done [#allocation9], 1024
        $region68: #{tpu_custom_call.1} parent=55 // pred_fallthru
          _
        // Predicated region
        $region69: #{tpu_custom_call.1} parent=55 // pred_check
          %p416 = pneg %p160
        $region70: #{tpu_custom_call.1} parent=55 // pred_check_branch
          %418 = sbr.rel (%p416) target = $region72
        $region71: #{tpu_custom_call.1} parent=55 // pred_region
          %419 = dma.done [#allocation12], 1024
        $region72: #{tpu_custom_call.1} parent=55 // pred_fallthru
          _
        %p420 = pneg %p69
        %p421 = pneg %p66
        %s422 = sand.u32 %s36, 1
        %s423 = scalar_lea.sflag [#allocation9], %s422
        %s424 = sand.u32 %s84, 1
        %s425 = smul.addr %s424, 8
        %s426 = scalar_lea.vmem [#allocation8], %s425
        %p427 = pneg %p97
        %p428 = pneg %p94
        %p429 = pneg %p118
        %p430 = pneg %p115
        %p431 = pneg %p139
        %p432 = pneg %p136
        %p433 = pneg %p160
        %p434 = pneg %p157
        %p435 = pneg %p181
        %p436 = pneg %p178
        %p437 = pneg %p202
        %p438 = pneg %p199
        %p439 = pneg %p223
        %p440 = pneg %p220
        %p441 = pneg %p244
        %p442 = pneg %p241
        %p443 = pneg %p272
        %p444 = pneg %p269
        %s445 = sand.u32 %s259, 1
        %s446 = scalar_lea.sflag [#allocation7], %s445
        %s447 = sand.u32 %s259, 1
        %s448 = smul.addr %s447, 8
        %s449 = scalar_lea.vmem [#allocation13], %s448
        %p450 = pneg %p300
        %p451 = pneg %p297
        %s452 = sand.u32 %s287, 1
        %s453 = scalar_lea.sflag [#allocation15], %s452
        %s454 = sand.u32 %s287, 1
        %s455 = smul.addr %s454, 8
        %s456 = scalar_lea.vmem [#allocation14], %s455
        %s457 = sld [smem:[#allocation2]]
        %s458 = sld [smem:[#allocation3]]
        %s459 = sld [smem:[#allocation4]]
        %v460 = vld [vmem:[#allocation5] sm:$0xff]
        %v461 = vld [vmem:[#allocation10] sm:$0xff]
        %v462 = vld [vmem:[#allocation10 + $0x8] sm:$0xff]
        %v463 = vld [vmem:[#allocation10 + $0x10] sm:$0xff]
        %v464 = vld [vmem:[#allocation10 + $0x18] sm:$0xff]
        %v465 = vld [vmem:[#allocation10 + $0x20] sm:$0xff]
        %v466 = vld [vmem:[#allocation10 + $0x28] sm:$0xff]
        %v467 = vld [vmem:[#allocation10 + $0x30] sm:$0xff]
        %v468 = vld [vmem:[#allocation10 + $0x38] sm:$0xff]
        %v469 = vld [vmem:[%s3] sm:$0x3]
        %v471 = vlaneseq
        %v472 = vshrl.u32 %v471, 7
        %v473 = vsub.s32 0, %v472
        %v474 = vrot.slane %v469, %v473
        %v475 = vlaneseq
        %v476 = vshrl.u32 %v475, 7
        %v477 = vsub.s32 1, %v476
        %v478 = vrot.slane %v469, %v477
        %vm481 = vcmask 261120
        %v483 = vsel %vm481, %v460, 0
        %485 = vmatprep.subr.mxu0 0.0
        %486 = vmatpush1.msra.mxu0 0.0
        %487 = vmatprep.subr.mxu0 0.0
        %488 = vmatpush1.msra.mxu0 0.0
        %489 = vmatprep.subr.mxu0 0.0
        %490 = vmatpush1.msra.mxu0 0.0
        %491 = vmatprep.subr.mxu0 0.0
        %492 = vmatpush1.msra.mxu0 0.0
        %493 = vmatprep.subr.mxu0 0.0
        %494 = vmatpush1.msra.mxu0 0.0
        %495 = vmatprep.subr.mxu0 0.0
        %496 = vmatpush1.msra.mxu0 0.0
        %497 = vmatprep.subr.mxu0 0.0
        %498 = vmatpush1.msra.mxu0 0.0
        %499 = vmatprep.subr.mxu0 0.0
        %500 = vmatpush1.msra.mxu0 0.0
        %501 = vmatprep.subr.mxu0 0.0
        %502 = vmatpush1.msra.mxu0 0.0
        %503 = vmatprep.subr.mxu0 0.0
        %504 = vmatpush1.msra.mxu0 0.0
        %505 = vmatprep.subr.mxu0 0.0
        %506 = vmatpush1.msra.mxu0 0.0
        %507 = vmatprep.subr.mxu0 0.0
        %508 = vmatpush1.msra.mxu0 0.0
        %509 = vmatprep.subr.mxu0 %v468
        %510 = vmatpush1.msra.mxu0 %v467
        %511 = vmatprep.subr.mxu0 %v466
        %512 = vmatpush1.msra.mxu0 %v465
        %513 = vmatprep.subr.mxu0 %v464
        %514 = vmatpush1.msra.mxu0 %v463
        %515 = vmatprep.subr.mxu0 %v462
        %516 = vmatpush1.msra.mxu0 %v461
        %517 = vmatprep.subr.mxu0 0.0
        %518 = vmatpush2.msra.mxu0 0.0
        %519 = vmatprep.subr.mxu0 0.0
        %520 = vmatpush2.msra.mxu0 0.0
        %521 = vmatprep.subr.mxu0 0.0
        %522 = vmatpush2.msra.mxu0 0.0
        %523 = vmatprep.subr.mxu0 0.0
        %524 = vmatpush2.msra.mxu0 0.0
        %525 = vmatprep.subr.mxu0 0.0
        %526 = vmatpush2.msra.mxu0 0.0
        %527 = vmatprep.subr.mxu0 0.0
        %528 = vmatpush2.msra.mxu0 0.0
        %529 = vmatprep.subr.mxu0 0.0
        %530 = vmatpush2.msra.mxu0 0.0
        %531 = vmatprep.subr.mxu0 0.0
        %532 = vmatpush2.msra.mxu0 0.0
        %533 = vmatprep.subr.mxu0 0.0
        %534 = vmatpush2.msra.mxu0 0.0
        %535 = vmatprep.subr.mxu0 0.0
        %536 = vmatpush2.msra.mxu0 0.0
        %537 = vmatprep.subr.mxu0 0.0
        %538 = vmatpush2.msra.mxu0 0.0
        %539 = vmatprep.subr.mxu0 0.0
        %540 = vmatpush2.msra.mxu0 0.0
        %541 = vmatprep.subr.mxu0 0.0
        %542 = vmatpush2.msra.mxu0 0.0
        %543 = vmatprep.subr.mxu0 0.0
        %544 = vmatpush2.msra.mxu0 0.0
        %545 = vmatprep.subr.mxu0 0.0
        %546 = vmatpush2.msra.mxu0 0.0
        %547 = vmatprep.subr.mxu0 0.0
        %548 = vmatpush2.msra.mxu0 0.0
        %549 = vmatprep.mubr.f32.mxu0 0.0
        %550 = vmatmul.mubr.f32.gmra.mxu0 %v483
        %v551 = vpop.f32.mrf.mxu0
        %v552 = vadd.f32 %v474, %v551
        %v553 = vpop.f32.mrf.mxu0
        %v554 = vadd.f32 %v478, %v553
        %555 = vdwg.mxu0
        %v556 = vld [vmem:[%s407] sm:$0xff]
        %v557 = vmul.f32 %v554, 0.5
        %v558 = vmul.f32 %v557, 1.442695
        %v559 = vpow.pop %v558
        %v560 = vmul.f32 %v559, %v556
        %v561 = vadd.f32 %v552, %v560
        %v562 = vld [vmem:[#allocation11] sm:$0xff]
        %v563 = vld [vmem:[#allocation11 + $0x8] sm:$0xff]
        %v564 = vld [vmem:[#allocation11 + $0x10] sm:$0xff]
        %v565 = vld [vmem:[#allocation11 + $0x18] sm:$0xff]
        %v566 = vld [vmem:[#allocation11 + $0x20] sm:$0xff]
        %v567 = vld [vmem:[#allocation11 + $0x28] sm:$0xff]
        %v568 = vld [vmem:[#allocation11 + $0x30] sm:$0xff]
        %v569 = vld [vmem:[#allocation11 + $0x38] sm:$0xff]
        %v570 = vld [vmem:[%s5] sm:$0x3]
        %v572 = vlaneseq
        %v573 = vshrl.u32 %v572, 7
        %v574 = vsub.s32 0, %v573
        %v575 = vrot.slane %v570, %v574
        %v576 = vlaneseq
        %v577 = vshrl.u32 %v576, 7
        %v578 = vsub.s32 1, %v577
        %v579 = vrot.slane %v570, %v578
        %v583 = vsel %vm481, %v561, 0
        %585 = vmatprep.subr.mxu0 0.0
        %586 = vmatpush1.msra.mxu0 0.0
        %587 = vmatprep.subr.mxu0 0.0
        %588 = vmatpush1.msra.mxu0 0.0
        %589 = vmatprep.subr.mxu0 0.0
        %590 = vmatpush1.msra.mxu0 0.0
        %591 = vmatprep.subr.mxu0 0.0
        %592 = vmatpush1.msra.mxu0 0.0
        %593 = vmatprep.subr.mxu0 0.0
        %594 = vmatpush1.msra.mxu0 0.0
        %595 = vmatprep.subr.mxu0 0.0
        %596 = vmatpush1.msra.mxu0 0.0
        %597 = vmatprep.subr.mxu0 0.0
        %598 = vmatpush1.msra.mxu0 0.0
        %599 = vmatprep.subr.mxu0 0.0
        %600 = vmatpush1.msra.mxu0 0.0
        %601 = vmatprep.subr.mxu0 0.0
        %602 = vmatpush1.msra.mxu0 0.0
        %603 = vmatprep.subr.mxu0 0.0
        %604 = vmatpush1.msra.mxu0 0.0
        %605 = vmatprep.subr.mxu0 0.0
        %606 = vmatpush1.msra.mxu0 0.0
        %607 = vmatprep.subr.mxu0 0.0
        %608 = vmatpush1.msra.mxu0 0.0
        %609 = vmatprep.subr.mxu0 %v569
        %610 = vmatpush1.msra.mxu0 %v568
        %611 = vmatprep.subr.mxu0 %v567
        %612 = vmatpush1.msra.mxu0 %v566
        %613 = vmatprep.subr.mxu0 %v565
        %614 = vmatpush1.msra.mxu0 %v564
        %615 = vmatprep.subr.mxu0 %v563
        %616 = vmatpush1.msra.mxu0 %v562
        %617 = vmatprep.subr.mxu0 0.0
        %618 = vmatpush2.msra.mxu0 0.0
        %619 = vmatprep.subr.mxu0 0.0
        %620 = vmatpush2.msra.mxu0 0.0
        %621 = vmatprep.subr.mxu0 0.0
        %622 = vmatpush2.msra.mxu0 0.0
        %623 = vmatprep.subr.mxu0 0.0
        %624 = vmatpush2.msra.mxu0 0.0
        %625 = vmatprep.subr.mxu0 0.0
        %626 = vmatpush2.msra.mxu0 0.0
        %627 = vmatprep.subr.mxu0 0.0
        %628 = vmatpush2.msra.mxu0 0.0
        %629 = vmatprep.subr.mxu0 0.0
        %630 = vmatpush2.msra.mxu0 0.0
        %631 = vmatprep.subr.mxu0 0.0
        %632 = vmatpush2.msra.mxu0 0.0
        %633 = vmatprep.subr.mxu0 0.0
        %634 = vmatpush2.msra.mxu0 0.0
        %635 = vmatprep.subr.mxu0 0.0
        %636 = vmatpush2.msra.mxu0 0.0
        %637 = vmatprep.subr.mxu0 0.0
        %638 = vmatpush2.msra.mxu0 0.0
        %639 = vmatprep.subr.mxu0 0.0
        %640 = vmatpush2.msra.mxu0 0.0
        %641 = vmatprep.subr.mxu0 0.0
        %642 = vmatpush2.msra.mxu0 0.0
        %643 = vmatprep.subr.mxu0 0.0
        %644 = vmatpush2.msra.mxu0 0.0
        %645 = vmatprep.subr.mxu0 0.0
        %646 = vmatpush2.msra.mxu0 0.0
        %647 = vmatprep.subr.mxu0 0.0
        %648 = vmatpush2.msra.mxu0 0.0
        %649 = vmatprep.mubr.f32.mxu0 0.0
        %650 = vmatmul.mubr.f32.gmra.mxu0 %v583
        %v651 = vpop.f32.mrf.mxu0
        %v652 = vadd.f32 %v575, %v651
        %v653 = vpop.f32.mrf.mxu0
        %v654 = vadd.f32 %v579, %v653
        %655 = vdwg.mxu0
        %v656 = vstv %s458
        %v657 = vmul.f32 %v652, %v656
        %v658 = vstv %s457
        %v659 = vadd.f32 %v657, %v658
        %vm660 = vcmask 64512
        %661 = vst.msk [vmem:[%s449] sm:$0xff] %vm660, %v659
        %v662 = vmul.f32 %v654, 1.442695
        %v663 = vpow.pop %v662
        %v664 = vstv %s459
        %v665 = vadd.f32 %v663, %v664
        %v666 = vrsqrt.pop %v665
        %v667 = vmul.f32 %v665, %v666
        %vm668 = vcmp.eq.f32.partialorder %v665, inf
        %v669 = vsel %vm668, %v665, %v667
        %vm670 = vcmp.eq.f32.partialorder %v665, 0.0
        %v671 = vand.u32 %v665, 2147483648
        %v672 = vsel %vm670, %v671, %v669
        %v673 = vmul.f32 %v672, %v656
        %674 = vst.msk [vmem:[%s456] sm:$0xff] %vm660, %v673
        %s675 = sand.u32 %s259, 1
        %s676 = scalar_lea.sflag [#allocation7], %s675
        %s677 = sand.u32 %s259, 1
        %s678 = smul.addr %s677, 8
        %s679 = scalar_lea.vmem [#allocation13], %s678
        %s680 = sand.u32 %s287, 1
        %s681 = scalar_lea.sflag [#allocation15], %s680
        %s682 = sand.u32 %s287, 1
        %s683 = smul.addr %s682, 8
        %s684 = scalar_lea.vmem [#allocation14], %s683
        // Predicated region
        $region73: #{tpu_custom_call.1} parent=55 // pred_check
          %p685 = pneg %p269
        $region74: #{tpu_custom_call.1} parent=55 // pred_check_branch
          %687 = sbr.rel (%p685) target = $region76
        $region75: #{tpu_custom_call.1} parent=55 // pred_region
          %s689 = ssub.s32 128, 128
          %690 = vsyncadd %s676, %s689
          %s691 = sadd.s32 %s40, %s41
          %s692 = smul.addr %s691, 128
          %s693 = scalar_lea.hbm %s9, %s692
          %s695 = sshll.u32 %s679, 4
          %s696 = int_to_ptr.vmem [resolvable:$true] %s695
          %698 = dma.vmem_to_hbm [thread:$0]  %s696, 128, %s693, %s676
        $region76: #{tpu_custom_call.1} parent=55 // pred_fallthru
          _
        // Predicated region
        $region77: #{tpu_custom_call.1} parent=55 // pred_check
          %p699 = pneg %p297
        $region78: #{tpu_custom_call.1} parent=55 // pred_check_branch
          %701 = sbr.rel (%p699) target = $region80
        $region79: #{tpu_custom_call.1} parent=55 // pred_region
          %s703 = ssub.s32 128, 128
          %704 = vsyncadd %s681, %s703
          %s705 = sadd.s32 %s40, %s41
          %s706 = smul.addr %s705, 128
          %s707 = scalar_lea.hbm %s10, %s706
          %s709 = sshll.u32 %s684, 4
          %s710 = int_to_ptr.vmem [resolvable:$true] %s709
          %712 = dma.vmem_to_hbm [thread:$0]  %s710, 128, %s707, %s681
        $region80: #{tpu_custom_call.1} parent=55 // pred_fallthru
          _
      $region56: #{tpu_custom_call.1} parent=5 // pred_fallthru
        _
      %p713 = scmp.le.s32.totalorder 2, %s31
      // Predicated region
      $region81: #{tpu_custom_call.1} parent=5 // pred_check
        %p714 = pneg %p713
      $region82: #{tpu_custom_call.1} parent=5 // pred_check_branch
        %716 = sbr.rel (%p714) target = $region84
      $region83: #{tpu_custom_call.1} parent=5 // pred_region
        %s717 = ssub.s32 %s31, 2
        // Predicated region
        $region85: #{tpu_custom_call.1} parent=83 // pred_check
          %p718 = pneg %p275
        $region86: #{tpu_custom_call.1} parent=83 // pred_check_branch
          %720 = sbr.rel (%p718) target = $region88
        $region87: #{tpu_custom_call.1} parent=83 // pred_region
          %s721 = sand.u32 %s260, 1
          %s722 = scalar_lea.sflag [#allocation7], %s721
          %s723 = sand.u32 %s260, 1
          %s724 = smul.addr %s723, 8
          %s725 = scalar_lea.vmem [#allocation13], %s724
          %726 = dma.done %s722, 128
        $region88: #{tpu_custom_call.1} parent=83 // pred_fallthru
          _
        // Predicated region
        $region89: #{tpu_custom_call.1} parent=83 // pred_check
          %p727 = pneg %p303
        $region90: #{tpu_custom_call.1} parent=83 // pred_check_branch
          %729 = sbr.rel (%p727) target = $region92
        $region91: #{tpu_custom_call.1} parent=83 // pred_region
          %s730 = sand.u32 %s288, 1
          %s731 = scalar_lea.sflag [#allocation15], %s730
          %s732 = sand.u32 %s288, 1
          %s733 = smul.addr %s732, 8
          %s734 = scalar_lea.vmem [#allocation14], %s733
          %735 = dma.done %s731, 128
        $region92: #{tpu_custom_call.1} parent=83 // pred_fallthru
          _
      $region84: #{tpu_custom_call.1} parent=5 // pred_fallthru
        _
    $region6: #{tpu_custom_call.1} parent=1 // loop_footer
      %s35 = sadd.s32 1, %s31
    $region7: #{tpu_custom_call.1} parent=1 // loop_footer_branch
      %30 = sbr.rel target = $region3
    $region8: #{tpu_custom_call.1} parent=1 // loop_exit
      _
    %736 = vsyncpa [#allocation6], 1
    %s737 = scalar_lea.sflag [#allocation6], 1
    %738 = vsyncpa %s737, 1
    %739 = vsyncpa [#allocation9], 1
    %s740 = scalar_lea.sflag [#allocation9], 1
    %741 = vsyncpa %s740, 1
    %742 = vsyncpa [#allocation12], 1
    %743 = vsyncpa [#allocation7], 1
    %s744 = scalar_lea.sflag [#allocation7], 1
    %745 = vsyncpa %s744, 1
    %746 = vsyncpa [#allocation15], 1
    %s747 = scalar_lea.sflag [#allocation15], 1
    %748 = vsyncpa %s747, 1

</llo_original>
